<compile_context>
chip_gen: v5e
topology: v5e:2x2
jax: 0.10.0
libtpu: 0.0.40
codegen_flags: <defaults>
</compile_context>

<pallas_src>
import functools

import jax
import jax.numpy as jnp
from jax.experimental import pallas as pl
from jax.experimental.pallas import tpu as pltpu


def _round_up(n, m):
    return ((n + m - 1) // m) * m


def _bnn_last_local_kernel(x_ref, w1_ref, b1_ref, w2_ref, b2_ref,
                           wmu_ref, bmu_ref, wsig2_ref, bsig2_ref,
                           eps_ref, out_ref, *, coef_sample):
    # Deterministic hidden MLP (nn.Linear + ReLU); runs exactly once.
    x = x_ref[...]
    h = jnp.dot(x, w1_ref[...], preferred_element_type=jnp.float32) + b1_ref[...]
    h = jnp.maximum(h, 0.0)
    h = jnp.dot(h, w2_ref[...], preferred_element_type=jnp.float32) + b2_ref[...]
    h = jnp.maximum(h, 0.0)

    # BNN_local_Layer statistics (sample-independent -> computed once).
    mean = jnp.dot(h, wmu_ref[...], preferred_element_type=jnp.float32) + bmu_ref[...]
    sigma_sq = (jnp.dot(h * h, wsig2_ref[...], preferred_element_type=jnp.float32)
                + bsig2_ref[...])
    scaled_std = coef_sample * jnp.sqrt(sigma_sq)          # (B, Dp)

    # Broadcast once over all S samples; single lane-dense store of (S, B, Dp).
    eps = eps_ref[...]                                     # (S, B, Dp)
    out = mean[None, :, :] + scaled_std[None, :, :] * eps
    out_ref[...] = out.astype(out_ref.dtype)


def bnn_last_local_forward(x, params, eps, *, coef_sample=1.0):
    """x: (B, D_in) f32; eps: (S, B, D_out) f32; returns (S, B, D_out) f32."""
    w1, b1, w2, b2, w_mu, b_mu, w_sigma, b_sigma = params
    S, B, D_out = eps.shape
    H1 = w1.shape[1]
    H2 = w2.shape[1]

    # Lane-dense output: pad the output-feature axis up to a multiple of 128.
    # Zero padding is exact (padded mean/std columns are zero).
    Dp = _round_up(D_out, 128)
    pad = Dp - D_out
    w_mu_p = jnp.pad(w_mu, ((0, 0), (0, pad)))
    b_mu_p = jnp.pad(b_mu, ((0, pad),)).reshape(1, Dp)
    # Sample-independent squaring of the sigma parameters, done once here.
    w_sig2_p = jnp.pad(w_sigma * w_sigma, ((0, 0), (0, pad)))
    b_sig2_p = jnp.pad(b_sigma * b_sigma, ((0, pad),)).reshape(1, Dp)
    eps_p = jnp.pad(eps, ((0, 0), (0, 0), (0, pad)))

    # Biases passed as (1, H) so every operand is a >=2-D VMEM tile.
    b1_2d = b1.reshape(1, H1)
    b2_2d = b2.reshape(1, H2)

    # Whole-array VMEM blocks, no grid: the entire problem is a handful of
    # vregs, so per-grid-step pipeline overhead would dominate.
    vmem = pl.BlockSpec(memory_space=pltpu.MemorySpace.VMEM)
    kernel = functools.partial(_bnn_last_local_kernel,
                               coef_sample=float(coef_sample))

    out_p = pl.pallas_call(
        kernel,
        out_shape=jax.ShapeDtypeStruct((S, B, Dp), jnp.float32),
        in_specs=[vmem] * 10,
        out_specs=vmem,
    )(x, w1, b1_2d, w2, b2_2d, w_mu_p, b_mu_p, w_sig2_p, b_sig2_p, eps_p)

    return out_p[:, :, :D_out]


def _reference(x, params, eps, coef_sample=1.0):
    w1, b1, w2, b2, w_mu, b_mu, w_sigma, b_sigma = params
    h = jnp.maximum(x @ w1 + b1, 0.0)
    h = jnp.maximum(h @ w2 + b2, 0.0)
    mean = h @ w_mu + b_mu
    sigma_sq = (h ** 2) @ (w_sigma ** 2) + b_sigma ** 2
    return mean[None] + coef_sample * jnp.sqrt(sigma_sq)[None] * eps


if __name__ == "__main__":
    # Small shapes consistent with the module's defaults (2 hidden layers).
    B, D_in, H1, H2, D_out = 8, 16, 32, 32, 8
    num_sample = 2
    init_range = 0.01
    coef_sample = 1.0

    key = jax.random.PRNGKey(0)
    ks = jax.random.split(key, 10)

    # Deterministic synthetic parameters (shapes from __init__; not a checkpoint).
    w1 = jax.random.normal(ks[0], (D_in, H1), jnp.float32) * 0.1
    b1 = jax.random.normal(ks[1], (H1,), jnp.float32) * 0.1
    w2 = jax.random.normal(ks[2], (H1, H2), jnp.float32) * 0.1
    b2 = jax.random.normal(ks[3], (H2,), jnp.float32) * 0.1
    w_mu = jax.random.normal(ks[4], (H2, D_out), jnp.float32) * init_range
    b_mu = jax.random.normal(ks[5], (D_out,), jnp.float32) * init_range
    w_sigma = jax.random.uniform(ks[6], (H2, D_out), jnp.float32, 0.0, 1.0)
    b_sigma = jax.random.uniform(ks[7], (D_out,), jnp.float32, 0.0, 1.0)
    params = (w1, b1, w2, b2, w_mu, b_mu, w_sigma, b_sigma)

    x = jax.random.normal(ks[8], (B, D_in), jnp.float32)
    # eps drawn once per sample in the wrapper (the torch module draws it per forward).
    eps = jax.random.normal(ks[9], (num_sample, B, D_out), jnp.float32)

    fwd = jax.jit(bnn_last_local_forward, static_argnames=("coef_sample",))
    out = fwd(x, params, eps, coef_sample=coef_sample)
    out = jax.block_until_ready(out)

    ref = _reference(x, params, eps, coef_sample)
    assert out.shape == (num_sample, B, D_out)
    assert jnp.allclose(out, ref, atol=1e-5, rtol=1e-5), "mismatch vs JAX reference"

    print("KERNEL_OK")
</pallas_src>

<mosaic_0001>
module attributes {stable_mosaic.version = 11 : i64} {
  func.func @_bnn_last_local_kernel(%arg0: memref<8x16xf32, #tpu.memory_space<vmem>>, %arg1: memref<16x32xf32, #tpu.memory_space<vmem>>, %arg2: memref<1x32xf32, #tpu.memory_space<vmem>>, %arg3: memref<32x32xf32, #tpu.memory_space<vmem>>, %arg4: memref<1x32xf32, #tpu.memory_space<vmem>>, %arg5: memref<32x128xf32, #tpu.memory_space<vmem>>, %arg6: memref<1x128xf32, #tpu.memory_space<vmem>>, %arg7: memref<32x128xf32, #tpu.memory_space<vmem>>, %arg8: memref<1x128xf32, #tpu.memory_space<vmem>>, %arg9: memref<2x8x128xf32, #tpu.memory_space<vmem>>, %arg10: memref<2x8x128xf32, #tpu.memory_space<vmem>>) attributes {dimension_semantics = [], scalar_prefetch = 0 : i64, scratch_operands = 0 : i64, tpu.core_type = #tpu.core_type<tc>} {
    %c0 = arith.constant 0 : index
    %c0_0 = arith.constant 0 : index
    %0 = vector.load %arg0[%c0, %c0_0] : memref<8x16xf32, #tpu.memory_space<vmem>>, vector<8x16xf32>
    %c0_1 = arith.constant 0 : index
    %c0_2 = arith.constant 0 : index
    %1 = vector.load %arg1[%c0_1, %c0_2] : memref<16x32xf32, #tpu.memory_space<vmem>>, vector<16x32xf32>
    %cst = arith.constant dense<0.000000e+00> : vector<8x32xf32>
    %2 = tpu.matmul %0, %1, %cst {dimension_numbers = #tpu.dot_dimension_numbers<[1], [0], [0], [1], [0, 0, 1, 1], [], []>} : vector<8x16xf32>, vector<16x32xf32>, vector<8x32xf32> -> vector<8x32xf32>
    %c0_3 = arith.constant 0 : index
    %c0_4 = arith.constant 0 : index
    %3 = vector.load %arg2[%c0_3, %c0_4] : memref<1x32xf32, #tpu.memory_space<vmem>>, vector<1x32xf32>
    %4 = vector.broadcast %3 : vector<1x32xf32> to vector<8x32xf32>
    %5 = arith.addf %2, %4 : vector<8x32xf32>
    %cst_5 = arith.constant 0.000000e+00 : f32
    %6 = vector.broadcast %cst_5 : f32 to vector<8x32xf32>
    %7 = arith.maximumf %5, %6 : vector<8x32xf32>
    %c0_6 = arith.constant 0 : index
    %c0_7 = arith.constant 0 : index
    %8 = vector.load %arg3[%c0_6, %c0_7] : memref<32x32xf32, #tpu.memory_space<vmem>>, vector<32x32xf32>
    %cst_8 = arith.constant dense<0.000000e+00> : vector<8x32xf32>
    %9 = tpu.matmul %7, %8, %cst_8 {dimension_numbers = #tpu.dot_dimension_numbers<[1], [0], [0], [1], [0, 0, 1, 1], [], []>} : vector<8x32xf32>, vector<32x32xf32>, vector<8x32xf32> -> vector<8x32xf32>
    %c0_9 = arith.constant 0 : index
    %c0_10 = arith.constant 0 : index
    %10 = vector.load %arg4[%c0_9, %c0_10] : memref<1x32xf32, #tpu.memory_space<vmem>>, vector<1x32xf32>
    %11 = vector.broadcast %10 : vector<1x32xf32> to vector<8x32xf32>
    %12 = arith.addf %9, %11 : vector<8x32xf32>
    %cst_11 = arith.constant 0.000000e+00 : f32
    %13 = vector.broadcast %cst_11 : f32 to vector<8x32xf32>
    %14 = arith.maximumf %12, %13 : vector<8x32xf32>
    %c0_12 = arith.constant 0 : index
    %c0_13 = arith.constant 0 : index
    %15 = vector.load %arg5[%c0_12, %c0_13] : memref<32x128xf32, #tpu.memory_space<vmem>>, vector<32x128xf32>
    %cst_14 = arith.constant dense<0.000000e+00> : vector<8x128xf32>
    %16 = tpu.matmul %14, %15, %cst_14 {dimension_numbers = #tpu.dot_dimension_numbers<[1], [0], [0], [1], [0, 0, 1, 1], [], []>} : vector<8x32xf32>, vector<32x128xf32>, vector<8x128xf32> -> vector<8x128xf32>
    %c0_15 = arith.constant 0 : index
    %c0_16 = arith.constant 0 : index
    %17 = vector.load %arg6[%c0_15, %c0_16] : memref<1x128xf32, #tpu.memory_space<vmem>>, vector<1x128xf32>
    %18 = vector.broadcast %17 : vector<1x128xf32> to vector<8x128xf32>
    %19 = arith.addf %16, %18 : vector<8x128xf32>
    %20 = arith.mulf %14, %14 : vector<8x32xf32>
    %c0_17 = arith.constant 0 : index
    %c0_18 = arith.constant 0 : index
    %21 = vector.load %arg7[%c0_17, %c0_18] : memref<32x128xf32, #tpu.memory_space<vmem>>, vector<32x128xf32>
    %cst_19 = arith.constant dense<0.000000e+00> : vector<8x128xf32>
    %22 = tpu.matmul %20, %21, %cst_19 {dimension_numbers = #tpu.dot_dimension_numbers<[1], [0], [0], [1], [0, 0, 1, 1], [], []>} : vector<8x32xf32>, vector<32x128xf32>, vector<8x128xf32> -> vector<8x128xf32>
    %c0_20 = arith.constant 0 : index
    %c0_21 = arith.constant 0 : index
    %23 = vector.load %arg8[%c0_20, %c0_21] : memref<1x128xf32, #tpu.memory_space<vmem>>, vector<1x128xf32>
    %24 = vector.broadcast %23 : vector<1x128xf32> to vector<8x128xf32>
    %25 = arith.addf %22, %24 : vector<8x128xf32>
    %26 = math.sqrt %25 : vector<8x128xf32>
    %cst_22 = arith.constant 1.000000e+00 : f32
    %27 = vector.broadcast %cst_22 : f32 to vector<8x128xf32>
    %28 = arith.mulf %27, %26 : vector<8x128xf32>
    %c0_23 = arith.constant 0 : index
    %c0_24 = arith.constant 0 : index
    %c0_25 = arith.constant 0 : index
    %29 = vector.load %arg9[%c0_23, %c0_24, %c0_25] : memref<2x8x128xf32, #tpu.memory_space<vmem>>, vector<2x8x128xf32>
    %30 = vector.shape_cast %19 : vector<8x128xf32> to vector<1x8x128xf32>
    %31 = vector.shape_cast %28 : vector<8x128xf32> to vector<1x8x128xf32>
    %32 = vector.broadcast %31 : vector<1x8x128xf32> to vector<2x8x128xf32>
    %33 = arith.mulf %32, %29 : vector<2x8x128xf32>
    %34 = vector.broadcast %30 : vector<1x8x128xf32> to vector<2x8x128xf32>
    %35 = arith.addf %34, %33 : vector<2x8x128xf32>
    %c0_26 = arith.constant 0 : index
    %c0_27 = arith.constant 0 : index
    %c0_28 = arith.constant 0 : index
    %36 = vector.load %arg10[%c0_26, %c0_27, %c0_28] : memref<2x8x128xf32, #tpu.memory_space<vmem>>, vector<2x8x128xf32>
    tpu.vector_store %arg10[%c0_26, %c0_27, %c0_28], %35 {strides = array<i32>} : memref<2x8x128xf32, #tpu.memory_space<vmem>>, vector<2x8x128xf32>,
    return
  }
}

</mosaic_0001>

<llo_original>
// kernel: mul.2
$region0: #{mul.2}
  #allocation0 [shape = 's32[1]{0}', space=sflag, size = 0x4, scoped, tag = 'scoped memory for mul.2']
  %s0 = inlined_call_operand.vmem [shape: f32[32,8], index: 0, kind: input, shape index: {}, may-alias: {0,1}]
  %s1 = inlined_call_operand.vmem [shape: f32[32,8], index: 1, kind: input, shape index: {}, may-alias: {0,1}]
  %s2 = inlined_call_operand.vmem [shape: f32[32,8], index: 2, kind: output, shape index: {}]
  %v3 = vld [vmem:[%s0] sm:$0xff]
  %v4 = vld [vmem:[%s1] sm:$0xff]
  %5 = xla_tuple %v3, %v4
  %6 = xla_tuple %5
  %v7 = vmul.f32 %v3, %v4
  %8 = xla_tuple %v7
  %9 = vst [vmem:[%s2] sm:$0xff] %v7

// kernel: mul.3
$region0: #{mul.3}
  #allocation0 [shape = 's32[1]{0}', space=sflag, size = 0x4, scoped, tag = 'scoped memory for mul.3']
  %s0 = inlined_call_operand.vmem [shape: f32[8], index: 0, kind: input, shape index: {}, may-alias: {0,1}]
  %s1 = inlined_call_operand.vmem [shape: f32[8], index: 1, kind: input, shape index: {}, may-alias: {0,1}]
  %s2 = inlined_call_operand.vmem [shape: f32[8], index: 2, kind: output, shape index: {}]
  %v3 = vld [vmem:[%s0] sm:$0x1]
  %v4 = vld [vmem:[%s1] sm:$0x1]
  %5 = xla_tuple %v3, %v4
  %6 = xla_tuple %5
  %v7 = vmul.f32 %v3, %v4
  %8 = xla_tuple %v7
  %9 = vst [vmem:[%s2] sm:$0x1] %v7

// kernel: bnn_last_local_forward.1
$region0: #{bnn_last_local_forward.1}
  #allocation0 [shape = 'u32[]', space=smem, size = 0x4, offset = 0x4, fixed_abs, tag = 'smem constant byte address 0x4 - core index']
  #allocation1 [shape = 'u32[72,128]{1,0:T(1,128)}', space=vmem, size = 0x9000, scoped, tag = 'internal scratch']
  %s0 = inlined_call_operand.vmem [shape: f32[8,16], index: 0, kind: input, shape index: {}]
  %s1 = inlined_call_operand.vmem [shape: f32[16,32], index: 1, kind: input, shape index: {}]
  %s2 = inlined_call_operand.vmem [shape: f32[1,32], index: 2, kind: input, shape index: {}]
  %s3 = inlined_call_operand.vmem [shape: f32[32,32], index: 3, kind: input, shape index: {}]
  %s4 = inlined_call_operand.vmem [shape: f32[1,32], index: 4, kind: input, shape index: {}]
  %s5 = inlined_call_operand.vmem [shape: f32[32,128], index: 5, kind: input, shape index: {}]
  %s6 = inlined_call_operand.vmem [shape: f32[1,128], index: 6, kind: input, shape index: {}]
  %s7 = inlined_call_operand.vmem [shape: f32[32,128], index: 7, kind: input, shape index: {}]
  %s8 = inlined_call_operand.vmem [shape: f32[1,128], index: 8, kind: input, shape index: {}]
  %s9 = inlined_call_operand.vmem [shape: f32[2,8,128], index: 9, kind: input, shape index: {}]
  %s10 = inlined_call_operand.hbm [shape: f32[2,8,128], index: 10, kind: output, shape index: {}]
  %s11 = sld [smem:[#allocation0]]
  $region50: #{bnn_last_local_forward.1} parent=0
    _
  %s13 = ssub.s32 1, %s11
  %s14 = scalar_select 0, %s13, %s11
  $region1: #{bnn_last_local_forward.1} parent=0
    #allocation2 [shape = 'u8[8192]{0}', space=vmem, size = 0x2000, scoped, tag = 'output window, operand 0, single buffered']
    #allocation3 [shape = 's32[1]{0}', space=sflag, size = 0x4, scoped, tag = 'scoped memory for bnn_last_local_forward.1']
    %15 = vsyncpa [#allocation3], 0
    // Predicated region
    $region2: #{bnn_last_local_forward.1} parent=1 // pred_check
      _
    $region3: #{bnn_last_local_forward.1} parent=1 // pred_check_branch
      %17 = sbr.rel (0) target = $region5
    $region4: #{bnn_last_local_forward.1} parent=1 // pred_region
      _
    $region5: #{bnn_last_local_forward.1} parent=1 // pred_fallthru
      _
    // Predicated region
    $region6: #{bnn_last_local_forward.1} parent=1 // pred_check
      _
    $region7: #{bnn_last_local_forward.1} parent=1 // pred_check_branch
      %19 = sbr.rel (0) target = $region9
    $region8: #{bnn_last_local_forward.1} parent=1 // pred_region
      _
    $region9: #{bnn_last_local_forward.1} parent=1 // pred_fallthru
      _
    // Predicated region
    $region10: #{bnn_last_local_forward.1} parent=1 // pred_check
      _
    $region11: #{bnn_last_local_forward.1} parent=1 // pred_check_branch
      %21 = sbr.rel (0) target = $region13
    $region12: #{bnn_last_local_forward.1} parent=1 // pred_region
      _
    $region13: #{bnn_last_local_forward.1} parent=1 // pred_fallthru
      _
    // Predicated region
    $region14: #{bnn_last_local_forward.1} parent=1 // pred_check
      _
    $region15: #{bnn_last_local_forward.1} parent=1 // pred_check_branch
      %23 = sbr.rel (0) target = $region17
    $region16: #{bnn_last_local_forward.1} parent=1 // pred_region
      _
    $region17: #{bnn_last_local_forward.1} parent=1 // pred_fallthru
      _
    // Predicated region
    $region18: #{bnn_last_local_forward.1} parent=1 // pred_check
      _
    $region19: #{bnn_last_local_forward.1} parent=1 // pred_check_branch
      %25 = sbr.rel (0) target = $region21
    $region20: #{bnn_last_local_forward.1} parent=1 // pred_region
      _
    $region21: #{bnn_last_local_forward.1} parent=1 // pred_fallthru
      _
    // Predicated region
    $region22: #{bnn_last_local_forward.1} parent=1 // pred_check
      _
    $region23: #{bnn_last_local_forward.1} parent=1 // pred_check_branch
      %27 = sbr.rel (0) target = $region25
    $region24: #{bnn_last_local_forward.1} parent=1 // pred_region
      _
    $region25: #{bnn_last_local_forward.1} parent=1 // pred_fallthru
      _
    // Predicated region
    $region26: #{bnn_last_local_forward.1} parent=1 // pred_check
      _
    $region27: #{bnn_last_local_forward.1} parent=1 // pred_check_branch
      %29 = sbr.rel (0) target = $region29
    $region28: #{bnn_last_local_forward.1} parent=1 // pred_region
      _
    $region29: #{bnn_last_local_forward.1} parent=1 // pred_fallthru
      _
    // Predicated region
    $region30: #{bnn_last_local_forward.1} parent=1 // pred_check
      _
    $region31: #{bnn_last_local_forward.1} parent=1 // pred_check_branch
      %31 = sbr.rel (0) target = $region33
    $region32: #{bnn_last_local_forward.1} parent=1 // pred_region
      _
    $region33: #{bnn_last_local_forward.1} parent=1 // pred_fallthru
      _
    // Predicated region
    $region34: #{bnn_last_local_forward.1} parent=1 // pred_check
      _
    $region35: #{bnn_last_local_forward.1} parent=1 // pred_check_branch
      %33 = sbr.rel (0) target = $region37
    $region36: #{bnn_last_local_forward.1} parent=1 // pred_region
      _
    $region37: #{bnn_last_local_forward.1} parent=1 // pred_fallthru
      _
    // Predicated region
    $region38: #{bnn_last_local_forward.1} parent=1 // pred_check
      _
    $region39: #{bnn_last_local_forward.1} parent=1 // pred_check_branch
      %35 = sbr.rel (0) target = $region41
    $region40: #{bnn_last_local_forward.1} parent=1 // pred_region
      _
    $region41: #{bnn_last_local_forward.1} parent=1 // pred_fallthru
      _
    %v36 = vld [vmem:[%s0] sm:$0xff]
    %v37 = vld [vmem:[%s1] sm:$0xff]
    %v38 = vld [vmem:[%s1 + $0x8] sm:$0xff]
    %v39 = vld [vmem:[%s2] sm:$0x1]
    %v41 = vperm.slane %v39, 0
    %vm43 = vcmask 130048
    %v45 = vsel %vm43, %v36, 0
    %47 = vmatpush.msra.mxu0 0.0
    %48 = vmatpush.msra.mxu0 0.0
    %49 = vmatpush.msra.mxu0 0.0
    %50 = vmatpush.msra.mxu0 0.0
    %51 = vmatpush.msra.mxu0 0.0
    %52 = vmatpush.msra.mxu0 0.0
    %53 = vmatpush.msra.mxu0 0.0
    %54 = vmatpush.msra.mxu0 0.0
    %55 = vmatpush.msra.mxu0 0.0
    %56 = vmatpush.msra.mxu0 0.0
    %57 = vmatpush.msra.mxu0 0.0
    %58 = vmatpush.msra.mxu0 0.0
    %59 = vmatpush.msra.mxu0 0.0
    %60 = vmatpush.msra.mxu0 0.0
    %61 = vmatpush.msra.mxu0 %v38
    %62 = vmatpush.msra.mxu0 %v37
    %63 = vmatmul.f32.gmra.mxu0 %v45
    %v64 = vpop.f32.mrf.mxu0
    %v65 = vadd.f32 %v41, %v64
    %66 = vdwg.mxu0
    %v67 = vmax.f32 %v65, 0.0
    %v68 = vld [vmem:[%s3] sm:$0xff]
    %v69 = vld [vmem:[%s3 + $0x8] sm:$0xff]
    %v70 = vld [vmem:[%s3 + $0x10] sm:$0xff]
    %v71 = vld [vmem:[%s3 + $0x18] sm:$0xff]
    %v72 = vld [vmem:[%s4] sm:$0x1]
    %v74 = vperm.slane %v72, 0
    %vm76 = vcmask 261120
    %v78 = vsel %vm76, %v67, 0
    %80 = vmatpush.msra.mxu0 0.0
    %81 = vmatpush.msra.mxu0 0.0
    %82 = vmatpush.msra.mxu0 0.0
    %83 = vmatpush.msra.mxu0 0.0
    %84 = vmatpush.msra.mxu0 0.0
    %85 = vmatpush.msra.mxu0 0.0
    %86 = vmatpush.msra.mxu0 0.0
    %87 = vmatpush.msra.mxu0 0.0
    %88 = vmatpush.msra.mxu0 0.0
    %89 = vmatpush.msra.mxu0 0.0
    %90 = vmatpush.msra.mxu0 0.0
    %91 = vmatpush.msra.mxu0 0.0
    %92 = vmatpush.msra.mxu0 %v71
    %93 = vmatpush.msra.mxu0 %v70
    %94 = vmatpush.msra.mxu0 %v69
    %95 = vmatpush.msra.mxu0 %v68
    %96 = vmatmul.f32.gmra.mxu0 %v78
    %v97 = vpop.f32.mrf.mxu0
    %v98 = vadd.f32 %v74, %v97
    %99 = vdwg.mxu0
    %v100 = vmax.f32 %v98, 0.0
    %v101 = vld [vmem:[%s5] sm:$0xff]
    %v102 = vld [vmem:[%s5 + $0x8] sm:$0xff]
    %v103 = vld [vmem:[%s5 + $0x10] sm:$0xff]
    %v104 = vld [vmem:[%s5 + $0x18] sm:$0xff]
    %v105 = vld [vmem:[%s6] sm:$0x1]
    %v107 = vperm.slane %v105, 0
    %v110 = vsel %vm76, %v100, 0
    %112 = vmatpush.msra.mxu0 0.0
    %113 = vmatpush.msra.mxu0 0.0
    %114 = vmatpush.msra.mxu0 0.0
    %115 = vmatpush.msra.mxu0 0.0
    %116 = vmatpush.msra.mxu0 0.0
    %117 = vmatpush.msra.mxu0 0.0
    %118 = vmatpush.msra.mxu0 0.0
    %119 = vmatpush.msra.mxu0 0.0
    %120 = vmatpush.msra.mxu0 0.0
    %121 = vmatpush.msra.mxu0 0.0
    %122 = vmatpush.msra.mxu0 0.0
    %123 = vmatpush.msra.mxu0 0.0
    %124 = vmatpush.msra.mxu0 %v104
    %125 = vmatpush.msra.mxu0 %v103
    %126 = vmatpush.msra.mxu0 %v102
    %127 = vmatpush.msra.mxu0 %v101
    %128 = vmatmul.f32.gmra.mxu0 %v110
    %v129 = vpop.f32.mrf.mxu0
    %v130 = vadd.f32 %v107, %v129
    %131 = vdwg.mxu0
    %v132 = vmul.f32 %v100, %v100
    %v133 = vld [vmem:[%s7] sm:$0xff]
    %v134 = vld [vmem:[%s7 + $0x8] sm:$0xff]
    %v135 = vld [vmem:[%s7 + $0x10] sm:$0xff]
    %v136 = vld [vmem:[%s7 + $0x18] sm:$0xff]
    %v137 = vld [vmem:[%s8] sm:$0x1]
    %v139 = vperm.slane %v137, 0
    %v142 = vsel %vm76, %v132, 0
    %144 = vmatpush.msra.mxu0 0.0
    %145 = vmatpush.msra.mxu0 0.0
    %146 = vmatpush.msra.mxu0 0.0
    %147 = vmatpush.msra.mxu0 0.0
    %148 = vmatpush.msra.mxu0 0.0
    %149 = vmatpush.msra.mxu0 0.0
    %150 = vmatpush.msra.mxu0 0.0
    %151 = vmatpush.msra.mxu0 0.0
    %152 = vmatpush.msra.mxu0 0.0
    %153 = vmatpush.msra.mxu0 0.0
    %154 = vmatpush.msra.mxu0 0.0
    %155 = vmatpush.msra.mxu0 0.0
    %156 = vmatpush.msra.mxu0 %v136
    %157 = vmatpush.msra.mxu0 %v135
    %158 = vmatpush.msra.mxu0 %v134
    %159 = vmatpush.msra.mxu0 %v133
    %160 = vmatmul.f32.gmra.mxu0 %v142
    %v161 = vpop.f32.mrf.mxu0
    %v162 = vadd.f32 %v139, %v161
    %163 = vdwg.mxu0
    %v164 = vrsqrt.pop %v162
    %v165 = vmul.f32 %v164, %v162
    %v166 = vmul.f32 %v165, %v164
    %v167 = vmul.f32 0.5, %v166
    %v168 = vsub.f32 1.5, %v167
    %v169 = vmul.f32 %v164, %v168
    %v170 = vmul.f32 %v162, %v169
    %vm171 = vcmp.eq.f32.partialorder %v162, inf
    %v172 = vsel %vm171, %v162, %v170
    %vm173 = vcmp.eq.f32.partialorder %v162, 0.0
    %v174 = vand.u32 %v162, 2147483648
    %v175 = vsel %vm173, %v174, %v172
    %v176 = vld [vmem:[%s9] sm:$0xff]
    %v177 = vld [vmem:[%s9 + $0x8] sm:$0xff]
    %v178 = vmul.f32 %v175, %v176
    %v179 = vmul.f32 %v175, %v177
    %v180 = vadd.f32 %v130, %v178
    %v181 = vadd.f32 %v130, %v179
    %182 = vst [vmem:[#allocation2] sm:$0xff] %v180
    %183 = vst [vmem:[#allocation2 + $0x8] sm:$0xff] %v181
    // Predicated region
    $region42: #{bnn_last_local_forward.1} parent=1 // pred_check
      _
    $region43: #{bnn_last_local_forward.1} parent=1 // pred_check_branch
      %185 = sbr.rel (0) target = $region45
    $region44: #{bnn_last_local_forward.1} parent=1 // pred_region
      %187 = vsyncadd [#allocation3], 0
      %s188 = sshll.u32 [#allocation2], 4
      %s189 = int_to_ptr.vmem [resolvable:$true] %s188
      %s190 = sshll.u32 %s10, 4
      %s191 = int_to_ptr.hbm [resolvable:$true] %s190
      %196 = dma.vmem_to_hbm [thread:$0]  %s189, 256, %s191, [#allocation3], 128, 128, 8
    $region45: #{bnn_last_local_forward.1} parent=1 // pred_fallthru
      _
    // Predicated region
    $region46: #{bnn_last_local_forward.1} parent=1 // pred_check
      _
    $region47: #{bnn_last_local_forward.1} parent=1 // pred_check_branch
      %198 = sbr.rel (0) target = $region49
    $region48: #{bnn_last_local_forward.1} parent=1 // pred_region
      %200 = dma.done [#allocation3], 256
    $region49: #{bnn_last_local_forward.1} parent=1 // pred_fallthru
      _
    %201 = vsyncpa [#allocation3], 1

</llo_original>
